<compile_context>
chip_gen: v6e
topology: v6e:2x2x1
jax: 0.10.0
libtpu: 0.0.40
codegen_flags: <defaults>
</compile_context>

<pallas_src>
import functools

import jax
import jax.numpy as jnp
from jax.experimental import pallas as pl
from jax.experimental.pallas import tpu as pltpu


# ----------------------------------------------------------------------------
# Kernel: fused double (3x3 conv + folded BN + ReLU), one image per grid step.
# ----------------------------------------------------------------------------
def _double_conv_kernel(x_ref, k1_ref, b1_ref, k2_ref, b2_ref, o_ref):
    """x_ref : (1, H, W*Cin)         f32   row-flat NHWC input image
       k1_ref: (3, W*Cin,  W*Cmid)   bf16  banded conv1 weights (BN1 folded)
       b1_ref: (1, W*Cmid)           f32   conv1 bias + BN1 shift (tiled over W)
       k2_ref: (3, W*Cmid, W*Cout)   bf16  banded conv2 weights (BN2 folded)
       b2_ref: (1, W*Cout)           f32
       o_ref : (1, H, W*Cout)        f32   lane-dense output slab
    """
    H = x_ref.shape[1]

    # Exact 0/1 row-shift matrices.  Their zero first/last rows implement the
    # height-direction zero padding of the 3x3 conv for free.
    r = jax.lax.broadcasted_iota(jnp.int32, (H, H), 0)
    c = jax.lax.broadcasted_iota(jnp.int32, (H, H), 1)
    shift_dn = (r == c + 1).astype(jnp.bfloat16)   # out[h] = in[h-1]; 0 at h=0
    shift_up = (c == r + 1).astype(jnp.bfloat16)   # out[h] = in[h+1]; 0 at h=H-1

    def conv_bn_relu(x_rows, k_ref, b_ref):
        # x_rows: (H, W*C_in_layer) bf16  ->  (H, W*C_out_layer) f32, post-ReLU
        x_m1 = jnp.dot(shift_dn, x_rows,
                       preferred_element_type=jnp.float32).astype(jnp.bfloat16)
        x_p1 = jnp.dot(shift_up, x_rows,
                       preferred_element_type=jnp.float32).astype(jnp.bfloat16)
        acc = jnp.dot(x_m1, k_ref[0], preferred_element_type=jnp.float32)
        acc += jnp.dot(x_rows, k_ref[1], preferred_element_type=jnp.float32)
        acc += jnp.dot(x_p1, k_ref[2], preferred_element_type=jnp.float32)
        return jnp.maximum(acc + b_ref[...], 0.0)

    y1 = conv_bn_relu(x_ref[0].astype(jnp.bfloat16), k1_ref, b1_ref)   # stays in VMEM/vregs
    y2 = conv_bn_relu(y1.astype(jnp.bfloat16), k2_ref, b2_ref)
    o_ref[0] = y2.astype(o_ref.dtype)


def double_conv_rows(x_rows, k1, b1, k2, b2):
    """x_rows: (N, H, W*Cin) f32; k*: (3, W*Cin_l, W*Cout_l) bf16; b*: (1, W*Cout_l) f32."""
    N, H, WCin = x_rows.shape
    WCmid = k1.shape[2]
    WCout = k2.shape[2]

    grid_spec = pltpu.PrefetchScalarGridSpec(
        num_scalar_prefetch=0,
        grid=(N,),
        in_specs=[
            pl.BlockSpec((1, H, WCin), lambda n: (n, 0, 0)),
            pl.BlockSpec((3, WCin, WCmid), lambda n: (0, 0, 0)),
            pl.BlockSpec((1, WCmid), lambda n: (0, 0)),
            pl.BlockSpec((3, WCmid, WCout), lambda n: (0, 0, 0)),
            pl.BlockSpec((1, WCout), lambda n: (0, 0)),
        ],
        out_specs=pl.BlockSpec((1, H, WCout), lambda n: (n, 0, 0)),
    )

    return pl.pallas_call(
        _double_conv_kernel,
        out_shape=jax.ShapeDtypeStruct((N, H, WCout), x_rows.dtype),
        grid_spec=grid_spec,
        compiler_params=pltpu.CompilerParams(
            dimension_semantics=("parallel",)),
    )(x_rows, k1, b1, k2, b2)


# ----------------------------------------------------------------------------
# Wrapper-side weight preparation.
# ----------------------------------------------------------------------------
def _fold_bn(conv_bias, gamma, beta, running_mean, running_var, eps=1e-5):
    """Fold conv bias + eval-mode BatchNorm into per-channel scale/shift."""
    inv_std = 1.0 / jnp.sqrt(running_var + eps)
    scale = gamma * inv_std
    bias = (conv_bias - running_mean) * scale + beta
    return scale, bias


def _band_matrices(w_hwio, W):
    """Fold the kw (width) axis + width zero-padding of a 3x3 conv into banded
    matrices.  Returns (3, W*Cin, W*Cout):  y[h] += x_row[h + kh - 1] @ B[kh].
    B[kh][wi*Cin+ci, w*Cout+co] = w_hwio[kh, wi-w+1, ci, co] for |wi-w| <= 1.
    """
    _, _, Cin, Cout = w_hwio.shape
    mats = []
    for kh in range(3):
        B = jnp.zeros((W, Cin, W, Cout), jnp.float32)
        for kw in range(3):
            dx = kw - 1                       # wi = w + dx
            lo, hi = max(0, -dx), min(W, W - dx)
            ws = jnp.arange(lo, hi)
            B = B.at[ws + dx, :, ws, :].set(w_hwio[kh, kw])
        mats.append(B.reshape(W * Cin, W * Cout))
    return jnp.stack(mats, axis=0)


class InConvPallas:
    """Pallas equivalent of pt/nets/Unet_2Modal.py::inconv (double_conv), eval mode."""

    def __init__(self, in_ch, out_ch, key):
        k1, k2, k3, k4 = jax.random.split(key, 4)
        self.in_ch, self.out_ch = in_ch, out_ch
        # Conv weights in HWIO; PyTorch stores (Cout, Cin, kh, kw).
        self.w1 = 0.1 * jax.random.normal(k1, (3, 3, in_ch, out_ch), jnp.float32)
        self.b1 = 0.1 * jax.random.normal(k2, (out_ch,), jnp.float32)
        self.w2 = 0.1 * jax.random.normal(k3, (3, 3, out_ch, out_ch), jnp.float32)
        self.b2 = 0.1 * jax.random.normal(k4, (out_ch,), jnp.float32)
        # BatchNorm params at deterministic PyTorch init values (eval mode).
        ones = jnp.ones((out_ch,), jnp.float32)
        zeros = jnp.zeros((out_ch,), jnp.float32)
        s1, self.bias1 = _fold_bn(self.b1, ones, zeros, zeros, ones)
        s2, self.bias2 = _fold_bn(self.b2, ones, zeros, zeros, ones)
        # Fold the BN scale straight into the conv weights (kernel epilogue is add+ReLU).
        self.w1_folded = self.w1 * s1[None, None, None, :]
        self.w2_folded = self.w2 * s2[None, None, None, :]

    @functools.partial(jax.jit, static_argnums=0)
    def __call__(self, x_nchw):
        N, Cin, H, W = x_nchw.shape
        Cout = self.out_ch
        # NCHW -> row-flat NHWC.  TODO(synk): keep the surrounding U-Net NHWC to
        # drop these boundary transposes entirely (they are pure HBM traffic).
        x_rows = jnp.transpose(x_nchw, (0, 2, 3, 1)).reshape(N, H, W * Cin)

        # Banded weight matrices depend on W only; constants under jit.
        k1 = _band_matrices(self.w1_folded, W).astype(jnp.bfloat16)
        k2 = _band_matrices(self.w2_folded, W).astype(jnp.bfloat16)
        b1 = jnp.tile(self.bias1, W).reshape(1, W * Cout).astype(jnp.float32)
        b2 = jnp.tile(self.bias2, W).reshape(1, W * Cout).astype(jnp.float32)

        y_rows = double_conv_rows(x_rows, k1, b1, k2, b2)       # (N, H, W*Cout)
        y = y_rows.reshape(N, H, W, Cout)
        return jnp.transpose(y, (0, 3, 1, 2))                   # back to NCHW


# ----------------------------------------------------------------------------
# Pure-JAX reference (same folded weights) for a numerical sanity check.
# ----------------------------------------------------------------------------
def _reference(x_nchw, model):
    def conv_bn_relu(x, w_hwio, bias):
        y = jax.lax.conv_general_dilated(
            x, w_hwio, window_strides=(1, 1), padding="SAME",
            dimension_numbers=("NCHW", "HWIO", "NCHW"))
        y = y + bias[None, :, None, None]
        return jnp.maximum(y, 0.0)

    y = conv_bn_relu(x_nchw, model.w1_folded, model.bias1)
    return conv_bn_relu(y, model.w2_folded, model.bias2)


if __name__ == "__main__":
    key = jax.random.PRNGKey(0)
    k_param, k_x = jax.random.split(key)

    N, Cin, H, W = 2, 4, 16, 16
    Cout = 8

    model = InConvPallas(Cin, Cout, k_param)
    x = jax.random.normal(k_x, (N, Cin, H, W), jnp.float32)

    y = model(x)
    jax.block_until_ready(y)
    assert y.shape == (N, Cout, H, W), y.shape

    # Numerical sanity check against XLA conv (bf16 MXU operands -> loose tol).
    ref = _reference(x, model)
    err = float(jnp.max(jnp.abs(y - ref)))
    assert err < 5e-2, f"max abs error vs reference: {err}"

    print("KERNEL_OK")
</pallas_src>

<mosaic_0001>
module attributes {stable_mosaic.version = 11 : i64} {
  func.func @_double_conv_kernel(%arg0: i32, %arg1: memref<1x16x64xf32, #tpu.memory_space<vmem>>, %arg2: memref<3x64x128xbf16, #tpu.memory_space<vmem>>, %arg3: memref<1x128xf32, #tpu.memory_space<vmem>>, %arg4: memref<3x128x128xbf16, #tpu.memory_space<vmem>>, %arg5: memref<1x128xf32, #tpu.memory_space<vmem>>, %arg6: memref<1x16x128xf32, #tpu.memory_space<vmem>>) attributes {dimension_semantics = [#tpu.dimension_semantics<parallel>], iteration_bounds = array<i64: 2>, scalar_prefetch = 0 : i64, scratch_operands = 0 : i64, tpu.core_type = #tpu.core_type<tc>, window_params = [{transform_indices = @transform_0, window_bounds = array<i64: 1, 16, 64>}, {pipeline_mode = #tpu.pipeline_mode<synchronous>, transform_indices = @transform_1, window_bounds = array<i64: 3, 64, 128>}, {pipeline_mode = #tpu.pipeline_mode<synchronous>, transform_indices = @transform_2, window_bounds = array<i64: 1, 128>}, {pipeline_mode = #tpu.pipeline_mode<synchronous>, transform_indices = @transform_3, window_bounds = array<i64: 3, 128, 128>}, {pipeline_mode = #tpu.pipeline_mode<synchronous>, transform_indices = @transform_4, window_bounds = array<i64: 1, 128>}, {transform_indices = @transform_5, window_bounds = array<i64: 1, 16, 128>}]} {
    %0 = tpu.iota {dimensions = array<i32: 0>} : vector<16x16xi32>
    %1 = tpu.iota {dimensions = array<i32: 1>} : vector<16x16xi32>
    %c1_i32 = arith.constant 1 : i32
    %2 = vector.broadcast %c1_i32 : i32 to vector<16x16xi32>
    %3 = arith.addi %1, %2 : vector<16x16xi32>
    %4 = arith.cmpi eq, %0, %3 : vector<16x16xi32>
    %5 = arith.extui %4 : vector<16x16xi1> to vector<16x16xi32>
    %6 = arith.sitofp %5 : vector<16x16xi32> to vector<16x16xf32>
    %7 = arith.truncf %6 : vector<16x16xf32> to vector<16x16xbf16>
    %c1_i32_0 = arith.constant 1 : i32
    %8 = vector.broadcast %c1_i32_0 : i32 to vector<16x16xi32>
    %9 = arith.addi %0, %8 : vector<16x16xi32>
    %10 = arith.cmpi eq, %1, %9 : vector<16x16xi32>
    %11 = arith.extui %10 : vector<16x16xi1> to vector<16x16xi32>
    %12 = arith.sitofp %11 : vector<16x16xi32> to vector<16x16xf32>
    %13 = arith.truncf %12 : vector<16x16xf32> to vector<16x16xbf16>
    %c0 = arith.constant 0 : index
    %c0_1 = arith.constant 0 : index
    %c0_2 = arith.constant 0 : index
    %14 = vector.load %arg1[%c0, %c0_1, %c0_2] : memref<1x16x64xf32, #tpu.memory_space<vmem>>, vector<1x16x64xf32>
    %15 = vector.shape_cast %14 : vector<1x16x64xf32> to vector<16x64xf32>
    %16 = arith.truncf %15 : vector<16x64xf32> to vector<16x64xbf16>
    %cst = arith.constant dense<0.000000e+00> : vector<16x64xf32>
    %17 = tpu.matmul %7, %16, %cst {dimension_numbers = #tpu.dot_dimension_numbers<[1], [0], [0], [1], [0, 0, 1, 1], [], []>} : vector<16x16xbf16>, vector<16x64xbf16>, vector<16x64xf32> -> vector<16x64xf32>
    %18 = arith.truncf %17 : vector<16x64xf32> to vector<16x64xbf16>
    %cst_3 = arith.constant dense<0.000000e+00> : vector<16x64xf32>
    %19 = tpu.matmul %13, %16, %cst_3 {dimension_numbers = #tpu.dot_dimension_numbers<[1], [0], [0], [1], [0, 0, 1, 1], [], []>} : vector<16x16xbf16>, vector<16x64xbf16>, vector<16x64xf32> -> vector<16x64xf32>
    %20 = arith.truncf %19 : vector<16x64xf32> to vector<16x64xbf16>
    %c0_4 = arith.constant 0 : index
    %c0_5 = arith.constant 0 : index
    %c0_6 = arith.constant 0 : index
    %21 = vector.load %arg2[%c0_4, %c0_5, %c0_6] : memref<3x64x128xbf16, #tpu.memory_space<vmem>>, vector<1x64x128xbf16>
    %22 = vector.shape_cast %21 : vector<1x64x128xbf16> to vector<64x128xbf16>
    %cst_7 = arith.constant dense<0.000000e+00> : vector<16x128xf32>
    %23 = tpu.matmul %18, %22, %cst_7 {dimension_numbers = #tpu.dot_dimension_numbers<[1], [0], [0], [1], [0, 0, 1, 1], [], []>} : vector<16x64xbf16>, vector<64x128xbf16>, vector<16x128xf32> -> vector<16x128xf32>
    %c1 = arith.constant 1 : index
    %c0_8 = arith.constant 0 : index
    %c0_9 = arith.constant 0 : index
    %24 = vector.load %arg2[%c1, %c0_8, %c0_9] : memref<3x64x128xbf16, #tpu.memory_space<vmem>>, vector<1x64x128xbf16>
    %25 = vector.shape_cast %24 : vector<1x64x128xbf16> to vector<64x128xbf16>
    %cst_10 = arith.constant dense<0.000000e+00> : vector<16x128xf32>
    %26 = tpu.matmul %16, %25, %cst_10 {dimension_numbers = #tpu.dot_dimension_numbers<[1], [0], [0], [1], [0, 0, 1, 1], [], []>} : vector<16x64xbf16>, vector<64x128xbf16>, vector<16x128xf32> -> vector<16x128xf32>
    %27 = arith.addf %23, %26 : vector<16x128xf32>
    %c2 = arith.constant 2 : index
    %c0_11 = arith.constant 0 : index
    %c0_12 = arith.constant 0 : index
    %28 = vector.load %arg2[%c2, %c0_11, %c0_12] : memref<3x64x128xbf16, #tpu.memory_space<vmem>>, vector<1x64x128xbf16>
    %29 = vector.shape_cast %28 : vector<1x64x128xbf16> to vector<64x128xbf16>
    %cst_13 = arith.constant dense<0.000000e+00> : vector<16x128xf32>
    %30 = tpu.matmul %20, %29, %cst_13 {dimension_numbers = #tpu.dot_dimension_numbers<[1], [0], [0], [1], [0, 0, 1, 1], [], []>} : vector<16x64xbf16>, vector<64x128xbf16>, vector<16x128xf32> -> vector<16x128xf32>
    %31 = arith.addf %27, %30 : vector<16x128xf32>
    %c0_14 = arith.constant 0 : index
    %c0_15 = arith.constant 0 : index
    %32 = vector.load %arg3[%c0_14, %c0_15] : memref<1x128xf32, #tpu.memory_space<vmem>>, vector<1x128xf32>
    %33 = vector.broadcast %32 : vector<1x128xf32> to vector<16x128xf32>
    %34 = arith.addf %31, %33 : vector<16x128xf32>
    %cst_16 = arith.constant 0.000000e+00 : f32
    %35 = vector.broadcast %cst_16 : f32 to vector<16x128xf32>
    %36 = arith.maximumf %34, %35 : vector<16x128xf32>
    %37 = arith.truncf %36 : vector<16x128xf32> to vector<16x128xbf16>
    %cst_17 = arith.constant dense<0.000000e+00> : vector<16x128xf32>
    %38 = tpu.matmul %7, %37, %cst_17 {dimension_numbers = #tpu.dot_dimension_numbers<[1], [0], [0], [1], [0, 0, 1, 1], [], []>} : vector<16x16xbf16>, vector<16x128xbf16>, vector<16x128xf32> -> vector<16x128xf32>
    %39 = arith.truncf %38 : vector<16x128xf32> to vector<16x128xbf16>
    %cst_18 = arith.constant dense<0.000000e+00> : vector<16x128xf32>
    %40 = tpu.matmul %13, %37, %cst_18 {dimension_numbers = #tpu.dot_dimension_numbers<[1], [0], [0], [1], [0, 0, 1, 1], [], []>} : vector<16x16xbf16>, vector<16x128xbf16>, vector<16x128xf32> -> vector<16x128xf32>
    %41 = arith.truncf %40 : vector<16x128xf32> to vector<16x128xbf16>
    %c0_19 = arith.constant 0 : index
    %c0_20 = arith.constant 0 : index
    %c0_21 = arith.constant 0 : index
    %42 = vector.load %arg4[%c0_19, %c0_20, %c0_21] : memref<3x128x128xbf16, #tpu.memory_space<vmem>>, vector<1x128x128xbf16>
    %43 = vector.shape_cast %42 : vector<1x128x128xbf16> to vector<128x128xbf16>
    %cst_22 = arith.constant dense<0.000000e+00> : vector<16x128xf32>
    %44 = tpu.matmul %39, %43, %cst_22 {dimension_numbers = #tpu.dot_dimension_numbers<[1], [0], [0], [1], [0, 0, 1, 1], [], []>} : vector<16x128xbf16>, vector<128x128xbf16>, vector<16x128xf32> -> vector<16x128xf32>
    %c1_23 = arith.constant 1 : index
    %c0_24 = arith.constant 0 : index
    %c0_25 = arith.constant 0 : index
    %45 = vector.load %arg4[%c1_23, %c0_24, %c0_25] : memref<3x128x128xbf16, #tpu.memory_space<vmem>>, vector<1x128x128xbf16>
    %46 = vector.shape_cast %45 : vector<1x128x128xbf16> to vector<128x128xbf16>
    %cst_26 = arith.constant dense<0.000000e+00> : vector<16x128xf32>
    %47 = tpu.matmul %37, %46, %cst_26 {dimension_numbers = #tpu.dot_dimension_numbers<[1], [0], [0], [1], [0, 0, 1, 1], [], []>} : vector<16x128xbf16>, vector<128x128xbf16>, vector<16x128xf32> -> vector<16x128xf32>
    %48 = arith.addf %44, %47 : vector<16x128xf32>
    %c2_27 = arith.constant 2 : index
    %c0_28 = arith.constant 0 : index
    %c0_29 = arith.constant 0 : index
    %49 = vector.load %arg4[%c2_27, %c0_28, %c0_29] : memref<3x128x128xbf16, #tpu.memory_space<vmem>>, vector<1x128x128xbf16>
    %50 = vector.shape_cast %49 : vector<1x128x128xbf16> to vector<128x128xbf16>
    %cst_30 = arith.constant dense<0.000000e+00> : vector<16x128xf32>
    %51 = tpu.matmul %41, %50, %cst_30 {dimension_numbers = #tpu.dot_dimension_numbers<[1], [0], [0], [1], [0, 0, 1, 1], [], []>} : vector<16x128xbf16>, vector<128x128xbf16>, vector<16x128xf32> -> vector<16x128xf32>
    %52 = arith.addf %48, %51 : vector<16x128xf32>
    %c0_31 = arith.constant 0 : index
    %c0_32 = arith.constant 0 : index
    %53 = vector.load %arg5[%c0_31, %c0_32] : memref<1x128xf32, #tpu.memory_space<vmem>>, vector<1x128xf32>
    %54 = vector.broadcast %53 : vector<1x128xf32> to vector<16x128xf32>
    %55 = arith.addf %52, %54 : vector<16x128xf32>
    %cst_33 = arith.constant 0.000000e+00 : f32
    %56 = vector.broadcast %cst_33 : f32 to vector<16x128xf32>
    %57 = arith.maximumf %55, %56 : vector<16x128xf32>
    %c0_34 = arith.constant 0 : index
    %c0_35 = arith.constant 0 : index
    %c0_36 = arith.constant 0 : index
    %58 = vector.load %arg6[%c0_34, %c0_35, %c0_36] : memref<1x16x128xf32, #tpu.memory_space<vmem>>, vector<1x16x128xf32>
    %59 = vector.shape_cast %58 : vector<1x16x128xf32> to vector<16x128xf32>
    %60 = vector.shape_cast %57 : vector<16x128xf32> to vector<1x16x128xf32>
    tpu.vector_store %arg6[%c0_34, %c0_35, %c0_36], %60 {strides = array<i32>} : memref<1x16x128xf32, #tpu.memory_space<vmem>>, vector<1x16x128xf32>,
    return
  }
  func.func @transform_0(%arg0: i32) -> (i32, i32, i32) {
    %c0_i32 = arith.constant 0 : i32
    %c0_i32_0 = arith.constant 0 : i32
    %c0_i32_1 = arith.constant 0 : i32
    return %arg0, %c0_i32, %c0_i32_0 : i32, i32, i32
  }
  func.func @transform_1(%arg0: i32) -> (i32, i32, i32) {
    %c0_i32 = arith.constant 0 : i32
    %c0_i32_0 = arith.constant 0 : i32
    %c0_i32_1 = arith.constant 0 : i32
    %c0_i32_2 = arith.constant 0 : i32
    return %c0_i32, %c0_i32_0, %c0_i32_1 : i32, i32, i32
  }
  func.func @transform_2(%arg0: i32) -> (i32, i32) {
    %c0_i32 = arith.constant 0 : i32
    %c0_i32_0 = arith.constant 0 : i32
    %c0_i32_1 = arith.constant 0 : i32
    return %c0_i32, %c0_i32_0 : i32, i32
  }
  func.func @transform_3(%arg0: i32) -> (i32, i32, i32) {
    %c0_i32 = arith.constant 0 : i32
    %c0_i32_0 = arith.constant 0 : i32
    %c0_i32_1 = arith.constant 0 : i32
    %c0_i32_2 = arith.constant 0 : i32
    return %c0_i32, %c0_i32_0, %c0_i32_1 : i32, i32, i32
  }
  func.func @transform_4(%arg0: i32) -> (i32, i32) {
    %c0_i32 = arith.constant 0 : i32
    %c0_i32_0 = arith.constant 0 : i32
    %c0_i32_1 = arith.constant 0 : i32
    return %c0_i32, %c0_i32_0 : i32, i32
  }
  func.func @transform_5(%arg0: i32) -> (i32, i32, i32) {
    %c0_i32 = arith.constant 0 : i32
    %c0_i32_0 = arith.constant 0 : i32
    %c0_i32_1 = arith.constant 0 : i32
    return %arg0, %c0_i32, %c0_i32_0 : i32, i32, i32
  }
}

</mosaic_0001>

<llo_original>
// kernel: tile.10
$region0: #{tile.10}
  #allocation0 [shape = 's32[1]{0}', space=sflag, size = 0x4, scoped, tag = 'scoped memory for tile.10']
  %s0 = inlined_call_operand.vmem [shape: f32[8], index: 0, kind: input, shape index: {}]
  %s1 = inlined_call_operand.vmem [shape: f32[16,8], index: 1, kind: output, shape index: {}]
  // Predicated region
  $region2: #{tile.10} parent=0 // pred_check
    _
  $region3: #{tile.10} parent=0 // pred_check_branch
    %3 = sbr.rel (0) target = $region5
  $region4: #{tile.10} parent=0 // pred_region
    _
  $region5: #{tile.10} parent=0 // pred_fallthru
    _
  %v4 = vld [vmem:[%s0] ss:$0 sm:$0xff]
  %5 = vst [vmem:[%s1] sm:$0xff] %v4
  %s6 = scalar_lea.vmem %s1, 8
  %7 = vst [vmem:[%s6] sm:$0xff] %v4

// kernel: tile.11
$region0: #{tile.11}
  %s0 = inlined_call_operand.vmem [shape: f32[16,8], index: 0, kind: input, shape index: {}]
  %s1 = inlined_call_operand.vmem [shape: f32[1,128], index: 1, kind: output, shape index: {}]
  $region1: #{tile.11} parent=0
    #allocation0 [shape = 'u8[4096]{0}', space=vmem, size = 0x1000, scoped, tag = 'scoped mem for output reshape']
    %v2 = vld [vmem:[%s0] sm:$0x1]
    %vm3 = vcmask 64512
    %4 = vst.msk [vmem:[#allocation0] sm:$0x1] %vm3, %v2
    %s5 = scalar_lea.vmem %s0, 15
    %v6 = vld [vmem:[%s5] sm:$0x1]
    %7 = vrot.lane.b32.xlu0 %v6, 120
    %v8 = vpop.permute.xlu0 %7
    %vm9 = vcmask 1048512
    %10 = vst.msk [vmem:[#allocation0] sm:$0x1] %vm9, %v8
    %s11 = scalar_lea.vmem %s0, 14
    %v12 = vld [vmem:[%s11] sm:$0x1]
    %13 = vrot.lane.b32.xlu0 %v12, 112
    %v14 = vpop.permute.xlu0 %13
    %vm15 = vcmask 982912
    %16 = vst.msk [vmem:[#allocation0] sm:$0x1] %vm15, %v14
    %s17 = scalar_lea.vmem %s0, 13
    %v18 = vld [vmem:[%s17] sm:$0x1]
    %19 = vrot.lane.b32.xlu0 %v18, 104
    %v20 = vpop.permute.xlu0 %19
    %vm21 = vcmask 917312
    %22 = vst.msk [vmem:[#allocation0] sm:$0x1] %vm21, %v20
    %s23 = scalar_lea.vmem %s0, 12
    %v24 = vld [vmem:[%s23] sm:$0x1]
    %25 = vrot.lane.b32.xlu0 %v24, 96
    %v26 = vpop.permute.xlu0 %25
    %vm27 = vcmask 851712
    %28 = vst.msk [vmem:[#allocation0] sm:$0x1] %vm27, %v26
    %s29 = scalar_lea.vmem %s0, 11
    %v30 = vld [vmem:[%s29] sm:$0x1]
    %31 = vrot.lane.b32.xlu0 %v30, 88
    %v32 = vpop.permute.xlu0 %31
    %vm33 = vcmask 786112
    %34 = vst.msk [vmem:[#allocation0] sm:$0x1] %vm33, %v32
    %s35 = scalar_lea.vmem %s0, 10
    %v36 = vld [vmem:[%s35] sm:$0x1]
    %37 = vrot.lane.b32.xlu0 %v36, 80
    %v38 = vpop.permute.xlu0 %37
    %vm39 = vcmask 720512
    %40 = vst.msk [vmem:[#allocation0] sm:$0x1] %vm39, %v38
    %s41 = scalar_lea.vmem %s0, 9
    %v42 = vld [vmem:[%s41] sm:$0x1]
    %43 = vrot.lane.b32.xlu0 %v42, 72
    %v44 = vpop.permute.xlu0 %43
    %vm45 = vcmask 654912
    %46 = vst.msk [vmem:[#allocation0] sm:$0x1] %vm45, %v44
    %s47 = scalar_lea.vmem %s0, 8
    %v48 = vld [vmem:[%s47] sm:$0x1]
    %49 = vrot.lane.b32.xlu0 %v48, 64
    %v50 = vpop.permute.xlu0 %49
    %vm51 = vcmask 589312
    %52 = vst.msk [vmem:[#allocation0] sm:$0x1] %vm51, %v50
    %s53 = scalar_lea.vmem %s0, 7
    %v54 = vld [vmem:[%s53] sm:$0x1]
    %55 = vrot.lane.b32.xlu0 %v54, 56
    %v56 = vpop.permute.xlu0 %55
    %vm57 = vcmask 523712
    %58 = vst.msk [vmem:[#allocation0] sm:$0x1] %vm57, %v56
    %s59 = scalar_lea.vmem %s0, 6
    %v60 = vld [vmem:[%s59] sm:$0x1]
    %61 = vrot.lane.b32.xlu0 %v60, 48
    %v62 = vpop.permute.xlu0 %61
    %vm63 = vcmask 458112
    %64 = vst.msk [vmem:[#allocation0] sm:$0x1] %vm63, %v62
    %s65 = scalar_lea.vmem %s0, 5
    %v66 = vld [vmem:[%s65] sm:$0x1]
    %67 = vrot.lane.b32.xlu0 %v66, 40
    %v68 = vpop.permute.xlu0 %67
    %vm69 = vcmask 392512
    %70 = vst.msk [vmem:[#allocation0] sm:$0x1] %vm69, %v68
    %s71 = scalar_lea.vmem %s0, 4
    %v72 = vld [vmem:[%s71] sm:$0x1]
    %73 = vrot.lane.b32.xlu0 %v72, 32
    %v74 = vpop.permute.xlu0 %73
    %vm75 = vcmask 326912
    %76 = vst.msk [vmem:[#allocation0] sm:$0x1] %vm75, %v74
    %s77 = scalar_lea.vmem %s0, 3
    %v78 = vld [vmem:[%s77] sm:$0x1]
    %79 = vrot.lane.b32.xlu0 %v78, 24
    %v80 = vpop.permute.xlu0 %79
    %vm81 = vcmask 261312
    %82 = vst.msk [vmem:[#allocation0] sm:$0x1] %vm81, %v80
    %s83 = scalar_lea.vmem %s0, 2
    %v84 = vld [vmem:[%s83] sm:$0x1]
    %85 = vrot.lane.b32.xlu0 %v84, 16
    %v86 = vpop.permute.xlu0 %85
    %vm87 = vcmask 195712
    %88 = vst.msk [vmem:[#allocation0] sm:$0x1] %vm87, %v86
    %s89 = scalar_lea.vmem %s0, 1
    %v90 = vld [vmem:[%s89] sm:$0x1]
    %91 = vrot.lane.b32.xlu0 %v90, 8
    %v92 = vpop.permute.xlu0 %91
    %vm93 = vcmask 130112
    %94 = vst.msk [vmem:[#allocation0] sm:$0x1] %vm93, %v92
    %s96 = sshll.u32 1, 1
    %s97 = ssub.s32 %s96, 1
    %v99 = vld [vmem:[#allocation0] sm:%s97]
    %s100 = sshll.u32 1, 1
    %s101 = ssub.s32 %s100, 1
    %102 = vst [vmem:[%s1] sm:%s101] %v99

// kernel: a_call__.1
$region0: #{a_call__.1}
  #allocation0 [shape = 'u32[]', space=smem, size = 0x4, offset = 0x4, fixed_abs, tag = 'smem constant byte address 0x4 - core index']
  #allocation1 [shape = 'u32[144,128]{1,0:T(1,128)}', space=vmem, size = 0x12000, scoped, tag = 'internal scratch']
  %s0 = inlined_call_operand.vmem [shape: f32[2,16,64], index: 0, kind: input, shape index: {}]
  %s1 = inlined_call_operand.vmem [shape: bf16[3,64,128], index: 1, kind: input, shape index: {}]
  %s2 = inlined_call_operand.vmem [shape: f32[1,128], index: 2, kind: input, shape index: {}]
  %s3 = inlined_call_operand.vmem [shape: bf16[3,128,128], index: 3, kind: input, shape index: {}]
  %s4 = inlined_call_operand.vmem [shape: f32[1,128], index: 4, kind: input, shape index: {}]
  %s5 = inlined_call_operand.vmem [shape: f32[2,16,128], index: 5, kind: output, shape index: {}]
  %s6 = sld [smem:[#allocation0]]
  $region53: #{a_call__.1} parent=0
    _
  %s8 = ssub.s32 1, %s6
  %s9 = scalar_select 0, %s8, %s6
  loop: start=0, step=1, limit=4
  $region2: #{a_call__.1} parent=0 // loop_pre_header
    _
  $region3: #{a_call__.1} parent=0 // loop_header
    %s11 = sphi 0, %s15
    %p12 = scmp.ge.s32.totalorder %s11, 4
    %s21 = sphi 0, %s23
    %s24 = sphi 0, %s21
    %s25 = sphi 0, %s24
    %s41 = sphi 0, %s25
    %s45 = sphi 0, %s45
    %s47 = sphi 0, %s45
    %s48 = sphi 0, %s47
    %s62 = sphi 0, %s48
    %s66 = sphi 0, %s66
    %s68 = sphi 0, %s66
    %s69 = sphi 0, %s68
    %s83 = sphi 0, %s69
    %s87 = sphi 0, %s87
    %s89 = sphi 0, %s87
    %s90 = sphi 0, %s89
    %s104 = sphi 0, %s90
    %s108 = sphi 0, %s108
    %s110 = sphi 0, %s108
    %s111 = sphi 0, %s110
    %s125 = sphi 0, %s111
    %s131 = sphi 0, %s133
    %s134 = sphi 0, %s131
    %s135 = sphi 0, %s134
    %s151 = sphi 0, %s135
  $region4: #{a_call__.1} parent=0 // loop_header_branch
    %14 = sbr.rel (%p12) target = $region8
  $region5: #{a_call__.1} parent=0 // loop_body
    %s16 = ssub.s32 %s11, 1
    %s17 = ssub.s32 %s11, 2
    %s18 = sadd.s32 %s11, 1
    %s19 = ssub.s32 %s11, %s18
    %p20 = scmp.eq.s32.totalorder %s19, 0
    %s22 = sadd.s32 %s21, 1
    %s23 = scalar_select %p20, %s21, %s22
    %p26 = pneg %p20
    %p27 = scmp.eq.s32.totalorder %s11, 1
    %p28 = por %p26, %p27
    %p29 = scmp.ne.s32.totalorder %s21, %s24
    %p30 = scmp.eq.s32.totalorder %s11, 0
    %p31 = por %p29, %p30
    %p32 = scmp.ne.s32.totalorder %s21, %s24
    %p33 = scmp.eq.s32.totalorder %s16, 1
    %p34 = por %p32, %p33
    %p35 = scmp.ne.s32.totalorder %s24, %s25
    %p36 = scmp.eq.s32.totalorder %s16, 0
    %p37 = por %p35, %p36
    %p38 = scmp.ne.s32.totalorder %s24, %s25
    %p39 = scmp.eq.s32.totalorder %s17, 1
    %p40 = por %p38, %p39
    %p42 = scmp.ne.s32.totalorder %s25, %s41
    %p43 = scmp.eq.s32.totalorder %s17, 0
    %p44 = por %p42, %p43
    %s46 = sadd.s32 %s45, 1
    %p49 = scmp.eq.s32.totalorder %s11, 1
    %p50 = scmp.ne.s32.totalorder %s45, %s47
    %p51 = scmp.eq.s32.totalorder %s11, 0
    %p52 = por %p50, %p51
    %p53 = scmp.ne.s32.totalorder %s45, %s47
    %p54 = scmp.eq.s32.totalorder %s16, 1
    %p55 = por %p53, %p54
    %p56 = scmp.ne.s32.totalorder %s47, %s48
    %p57 = scmp.eq.s32.totalorder %s16, 0
    %p58 = por %p56, %p57
    %p59 = scmp.ne.s32.totalorder %s47, %s48
    %p60 = scmp.eq.s32.totalorder %s17, 1
    %p61 = por %p59, %p60
    %p63 = scmp.ne.s32.totalorder %s48, %s62
    %p64 = scmp.eq.s32.totalorder %s17, 0
    %p65 = por %p63, %p64
    %s67 = sadd.s32 %s66, 1
    %p70 = scmp.eq.s32.totalorder %s11, 1
    %p71 = scmp.ne.s32.totalorder %s66, %s68
    %p72 = scmp.eq.s32.totalorder %s11, 0
    %p73 = por %p71, %p72
    %p74 = scmp.ne.s32.totalorder %s66, %s68
    %p75 = scmp.eq.s32.totalorder %s16, 1
    %p76 = por %p74, %p75
    %p77 = scmp.ne.s32.totalorder %s68, %s69
    %p78 = scmp.eq.s32.totalorder %s16, 0
    %p79 = por %p77, %p78
    %p80 = scmp.ne.s32.totalorder %s68, %s69
    %p81 = scmp.eq.s32.totalorder %s17, 1
    %p82 = por %p80, %p81
    %p84 = scmp.ne.s32.totalorder %s69, %s83
    %p85 = scmp.eq.s32.totalorder %s17, 0
    %p86 = por %p84, %p85
    %s88 = sadd.s32 %s87, 1
    %p91 = scmp.eq.s32.totalorder %s11, 1
    %p92 = scmp.ne.s32.totalorder %s87, %s89
    %p93 = scmp.eq.s32.totalorder %s11, 0
    %p94 = por %p92, %p93
    %p95 = scmp.ne.s32.totalorder %s87, %s89
    %p96 = scmp.eq.s32.totalorder %s16, 1
    %p97 = por %p95, %p96
    %p98 = scmp.ne.s32.totalorder %s89, %s90
    %p99 = scmp.eq.s32.totalorder %s16, 0
    %p100 = por %p98, %p99
    %p101 = scmp.ne.s32.totalorder %s89, %s90
    %p102 = scmp.eq.s32.totalorder %s17, 1
    %p103 = por %p101, %p102
    %p105 = scmp.ne.s32.totalorder %s90, %s104
    %p106 = scmp.eq.s32.totalorder %s17, 0
    %p107 = por %p105, %p106
    %s109 = sadd.s32 %s108, 1
    %p112 = scmp.eq.s32.totalorder %s11, 1
    %p113 = scmp.ne.s32.totalorder %s108, %s110
    %p114 = scmp.eq.s32.totalorder %s11, 0
    %p115 = por %p113, %p114
    %p116 = scmp.ne.s32.totalorder %s108, %s110
    %p117 = scmp.eq.s32.totalorder %s16, 1
    %p118 = por %p116, %p117
    %p119 = scmp.ne.s32.totalorder %s110, %s111
    %p120 = scmp.eq.s32.totalorder %s16, 0
    %p121 = por %p119, %p120
    %p122 = scmp.ne.s32.totalorder %s110, %s111
    %p123 = scmp.eq.s32.totalorder %s17, 1
    %p124 = por %p122, %p123
    %p126 = scmp.ne.s32.totalorder %s111, %s125
    %p127 = scmp.eq.s32.totalorder %s17, 0
    %p128 = por %p126, %p127
    %s129 = ssub.s32 %s11, %s18
    %p130 = scmp.eq.s32.totalorder %s129, 0
    %s132 = sadd.s32 %s131, 1
    %s133 = scalar_select %p130, %s131, %s132
    %p136 = pneg %p130
    %p137 = scmp.eq.s32.totalorder %s11, 1
    %p138 = por %p136, %p137
    %p139 = scmp.ne.s32.totalorder %s131, %s134
    %p140 = scmp.eq.s32.totalorder %s11, 0
    %p141 = por %p139, %p140
    %p142 = scmp.ne.s32.totalorder %s131, %s134
    %p143 = scmp.eq.s32.totalorder %s16, 1
    %p144 = por %p142, %p143
    %p145 = scmp.ne.s32.totalorder %s134, %s135
    %p146 = scmp.eq.s32.totalorder %s16, 0
    %p147 = por %p145, %p146
    %p148 = scmp.ne.s32.totalorder %s134, %s135
    %p149 = scmp.eq.s32.totalorder %s17, 1
    %p150 = por %p148, %p149
    %p152 = scmp.ne.s32.totalorder %s135, %s151
    %p153 = scmp.eq.s32.totalorder %s17, 0
    %p154 = por %p152, %p153
    %p155 = scmp.le.s32.totalorder 1, %s11
    %p156 = scmp.lt.s32.totalorder %s11, 3
    %p157 = pnand %p155, %p156
    %p158 = pneg %p157
    // Predicated region
    $region9: #{a_call__.1} parent=5 // pred_check
      _
    $region10: #{a_call__.1} parent=5 // pred_check_branch
      %160 = sbr.rel (%p157) target = $region12
    $region11: #{a_call__.1} parent=5 // pred_region
      %s161 = ssub.s32 %s11, 1
      // Predicated region
      $region13: #{a_call__.1} parent=11 // pred_check
        %p162 = pneg %p58
      $region14: #{a_call__.1} parent=11 // pred_check_branch
        %164 = sbr.rel (%p162) target = $region16
      $region15: #{a_call__.1} parent=11 // pred_region
        _
      $region16: #{a_call__.1} parent=11 // pred_fallthru
        _
      // Predicated region
      $region17: #{a_call__.1} parent=11 // pred_check
        %p165 = pneg %p79
      $region18: #{a_call__.1} parent=11 // pred_check_branch
        %167 = sbr.rel (%p165) target = $region20
      $region19: #{a_call__.1} parent=11 // pred_region
        _
      $region20: #{a_call__.1} parent=11 // pred_fallthru
        _
      // Predicated region
      $region21: #{a_call__.1} parent=11 // pred_check
        %p168 = pneg %p100
      $region22: #{a_call__.1} parent=11 // pred_check_branch
        %170 = sbr.rel (%p168) target = $region24
      $region23: #{a_call__.1} parent=11 // pred_region
        _
      $region24: #{a_call__.1} parent=11 // pred_fallthru
        _
      // Predicated region
      $region25: #{a_call__.1} parent=11 // pred_check
        %p171 = pneg %p121
      $region26: #{a_call__.1} parent=11 // pred_check_branch
        %173 = sbr.rel (%p171) target = $region28
      $region27: #{a_call__.1} parent=11 // pred_region
        _
      $region28: #{a_call__.1} parent=11 // pred_fallthru
        _
    $region12: #{a_call__.1} parent=5 // pred_fallthru
      _
    %p174 = scmp.lt.s32.totalorder %s11, 2
    // Predicated region
    $region29: #{a_call__.1} parent=5 // pred_check
      %p175 = pneg %p174
    $region30: #{a_call__.1} parent=5 // pred_check_branch
      %177 = sbr.rel (%p175) target = $region32
    $region31: #{a_call__.1} parent=5 // pred_region
      // Predicated region
      $region33: #{a_call__.1} parent=31 // pred_check
        %p178 = pneg %p31
      $region34: #{a_call__.1} parent=31 // pred_check_branch
        %180 = sbr.rel (%p178) target = $region36
      $region35: #{a_call__.1} parent=31 // pred_region
        %p181 = scmp.lt.s32.totalorder %s11, 1
        %s182 = scalar_select %p181, %s11, 1
        %s183 = smul.addr %s182, 2
        %s184 = smul.addr %s183, 8
        %s185 = scalar_lea.vmem %s0, %s184
      $region36: #{a_call__.1} parent=31 // pred_fallthru
        _
    $region32: #{a_call__.1} parent=5 // pred_fallthru
      _
    %p186 = scmp.le.s32.totalorder 1, %s11
    %p187 = scmp.lt.s32.totalorder %s11, 3
    %p188 = pnand %p186, %p187
    %p189 = pneg %p188
    // Predicated region
    $region37: #{a_call__.1} parent=5 // pred_check
      _
    $region38: #{a_call__.1} parent=5 // pred_check_branch
      %191 = sbr.rel (%p188) target = $region40
    $region39: #{a_call__.1} parent=5 // pred_region
      %s192 = ssub.s32 %s11, 1
      %p193 = scmp.lt.s32.totalorder %s16, 1
      %s194 = scalar_select %p193, %s16, 1
      %s195 = smul.addr %s194, 2
      %s196 = smul.addr %s195, 8
      %s197 = scalar_lea.vmem %s0, %s196
      %p198 = pneg %p37
      %p199 = pneg %p34
      %p200 = pneg %p58
      %p201 = pneg %p55
      %p202 = pneg %p79
      %p203 = pneg %p76
      %p204 = pneg %p100
      %p205 = pneg %p97
      %p206 = pneg %p121
      %p207 = pneg %p118
      %p208 = pneg %p147
      %p209 = pneg %p144
      %p210 = scmp.lt.s32.totalorder %s16, 1
      %s211 = scalar_select %p210, %s16, 1
      %s212 = smul.addr %s211, 2
      %s213 = smul.addr %s212, 8
      %s214 = scalar_lea.vmem %s5, %s213
      %p215 = scmp.lt.s32.totalorder %s16, 1
      %s216 = scalar_select %p215, %s16, 1
      %s217 = smul.addr %s216, 2
      %s218 = smul.addr %s217, 8
      %s219 = scalar_lea.vmem %s0, %s218
      %p220 = scmp.lt.s32.totalorder %s16, 1
      %s221 = scalar_select %p220, %s16, 1
      %s222 = smul.addr %s221, 2
      %s223 = smul.addr %s222, 8
      %s224 = scalar_lea.vmem %s5, %s223
      %v226 = vlaneseq
      %v227 = vshrl.u32 %v226, 7
      %v228 = vadd.s32 %v227, 8
      %v229 = vlaneseq
      %v230 = vand.u32 %v229, 127
      %v231 = vadd.s32 %v230, 1
      %vm232 = vcmp.eq.s32.totalorder %v227, %v231
      %vm233 = vcmp.eq.s32.totalorder %v228, %v231
      %v234 = vsel %vm232, 1, 0
      %v235 = vsel %vm233, 1, 0
      %v236 = vcvt.s32.f32 %v234
      %v237 = vcvt.s32.f32 %v235
      %v238 = vpack.c.bf16 %v237, %v236
      %v239 = vadd.s32 %v227, 1
      %v240 = vadd.s32 %v228, 1
      %vm241 = vcmp.eq.s32.totalorder %v230, %v239
      %vm242 = vcmp.eq.s32.totalorder %v230, %v240
      %v243 = vsel %vm241, 1, 0
      %v244 = vsel %vm242, 1, 0
      %v245 = vcvt.s32.f32 %v243
      %v246 = vcvt.s32.f32 %v244
      %v247 = vpack.c.bf16 %v246, %v245
      %v248 = vld [vmem:[%s219] sm:$0xff]
      %v249 = vld [vmem:[%s219 + $0x8] sm:$0xff]
      %v250 = vpack.c.bf16 %v249, %v248
      %vm251 = vcmask 130048
      %v253 = vsel %vm251, %v238, 0
      %255 = vmatprep.subr.bf16.mxu0 0
      %256 = vmatpush1.bf16.msra.mxu0 0
      %257 = vmatprep.subr.bf16.mxu0 0
      %258 = vmatpush1.bf16.msra.mxu0 0
      %259 = vmatprep.subr.bf16.mxu0 0
      %260 = vmatpush1.bf16.msra.mxu0 0
      %261 = vmatprep.subr.bf16.mxu0 0
      %262 = vmatpush1.bf16.msra.mxu0 0
      %263 = vmatprep.subr.bf16.mxu0 0
      %264 = vmatpush1.bf16.msra.mxu0 0
      %265 = vmatprep.subr.bf16.mxu0 0
      %266 = vmatpush1.bf16.msra.mxu0 0
      %267 = vmatprep.subr.bf16.mxu0 0
      %268 = vmatpush1.bf16.msra.mxu0 0
      %269 = vmatprep.subr.bf16.mxu0 0
      %270 = vmatpush1.bf16.msra.mxu0 %v250
      %271 = vmatprep.subr.bf16.mxu0 0
      %272 = vmatpush2.bf16.msra.mxu0 0
      %273 = vmatprep.subr.bf16.mxu0 0
      %274 = vmatpush2.bf16.msra.mxu0 0
      %275 = vmatprep.subr.bf16.mxu0 0
      %276 = vmatpush2.bf16.msra.mxu0 0
      %277 = vmatprep.subr.bf16.mxu0 0
      %278 = vmatpush2.bf16.msra.mxu0 0
      %279 = vmatprep.subr.bf16.mxu0 0
      %280 = vmatpush2.bf16.msra.mxu0 0
      %281 = vmatprep.subr.bf16.mxu0 0
      %282 = vmatpush2.bf16.msra.mxu0 0
      %283 = vmatprep.subr.bf16.mxu0 0
      %284 = vmatpush2.bf16.msra.mxu0 0
      %285 = vmatprep.subr.bf16.mxu0 0
      %286 = vmatpush2.bf16.msra.mxu0 0
      %287 = vmatprep.mubr.bf16.mxu0 0
      %288 = vmatmul.mubr.bf16.gmra.mxu0 %v253
      %v289 = vpop.f32.mrf.mxu0
      %v290 = vadd.f32 0.0, %v289
      %v291 = vpop.f32.mrf.mxu0
      %v292 = vpop.f32.mrf.mxu0
      %v293 = vadd.f32 0.0, %v292
      %v294 = vpop.f32.mrf.mxu0
      %295 = vdwg.mxu0
      %v296 = vpack.c.bf16 %v293, %v290
      %v298 = vsel %vm251, %v247, 0
      %300 = vmatprep.subr.bf16.mxu0 0
      %301 = vmatpush1.bf16.msra.mxu0 0
      %302 = vmatprep.subr.bf16.mxu0 0
      %303 = vmatpush1.bf16.msra.mxu0 0
      %304 = vmatprep.subr.bf16.mxu0 0
      %305 = vmatpush1.bf16.msra.mxu0 0
      %306 = vmatprep.subr.bf16.mxu0 0
      %307 = vmatpush1.bf16.msra.mxu0 0
      %308 = vmatprep.subr.bf16.mxu0 0
      %309 = vmatpush1.bf16.msra.mxu0 0
      %310 = vmatprep.subr.bf16.mxu0 0
      %311 = vmatpush1.bf16.msra.mxu0 0
      %312 = vmatprep.subr.bf16.mxu0 0
      %313 = vmatpush1.bf16.msra.mxu0 0
      %314 = vmatprep.subr.bf16.mxu0 0
      %315 = vmatpush1.bf16.msra.mxu0 %v250
      %316 = vmatprep.subr.bf16.mxu0 0
      %317 = vmatpush2.bf16.msra.mxu0 0
      %318 = vmatprep.subr.bf16.mxu0 0
      %319 = vmatpush2.bf16.msra.mxu0 0
      %320 = vmatprep.subr.bf16.mxu0 0
      %321 = vmatpush2.bf16.msra.mxu0 0
      %322 = vmatprep.subr.bf16.mxu0 0
      %323 = vmatpush2.bf16.msra.mxu0 0
      %324 = vmatprep.subr.bf16.mxu0 0
      %325 = vmatpush2.bf16.msra.mxu0 0
      %326 = vmatprep.subr.bf16.mxu0 0
      %327 = vmatpush2.bf16.msra.mxu0 0
      %328 = vmatprep.subr.bf16.mxu0 0
      %329 = vmatpush2.bf16.msra.mxu0 0
      %330 = vmatprep.subr.bf16.mxu0 0
      %331 = vmatpush2.bf16.msra.mxu0 0
      %332 = vmatprep.mubr.bf16.mxu0 0
      %333 = vmatmul.mubr.bf16.gmra.mxu0 %v298
      %v334 = vpop.f32.mrf.mxu0
      %v335 = vadd.f32 0.0, %v334
      %v336 = vpop.f32.mrf.mxu0
      %v337 = vpop.f32.mrf.mxu0
      %v338 = vadd.f32 0.0, %v337
      %v339 = vpop.f32.mrf.mxu0
      %340 = vdwg.mxu0
      %v341 = vpack.c.bf16 %v338, %v335
      %v342 = vld [vmem:[%s1] sm:$0xf]
      %v343 = vld [vmem:[%s1 + $0x4] sm:$0xf]
      %v344 = vld [vmem:[%s1 + $0x8] sm:$0xf]
      %v345 = vld [vmem:[%s1 + $0xc] sm:$0xf]
      %v346 = vld [vmem:[%s1 + $0x10] sm:$0xf]
      %v347 = vld [vmem:[%s1 + $0x14] sm:$0xf]
      %v348 = vld [vmem:[%s1 + $0x18] sm:$0xf]
      %v349 = vld [vmem:[%s1 + $0x1c] sm:$0xf]
      %s350 = scalar_lea.vmem %s1, 32
      %v351 = vld [vmem:[%s350] sm:$0xf]
      %v352 = vld [vmem:[%s350 + $0x4] sm:$0xf]
      %v353 = vld [vmem:[%s350 + $0x8] sm:$0xf]
      %v354 = vld [vmem:[%s350 + $0xc] sm:$0xf]
      %v355 = vld [vmem:[%s350 + $0x10] sm:$0xf]
      %v356 = vld [vmem:[%s350 + $0x14] sm:$0xf]
      %v357 = vld [vmem:[%s350 + $0x18] sm:$0xf]
      %v358 = vld [vmem:[%s350 + $0x1c] sm:$0xf]
      %v367 = vunpack.c.l.b16 %v351
      %v368 = vunpack.c.l.b16 %v352
      %v369 = vunpack.c.l.b16 %v353
      %v370 = vunpack.c.l.b16 %v354
      %v371 = vunpack.c.l.b16 %v355
      %v372 = vunpack.c.l.b16 %v356
      %v373 = vunpack.c.l.b16 %v357
      %v374 = vunpack.c.l.b16 %v358
      %v375 = vpack.c.b16 %v368, %v367
      %v376 = vpack.c.b16 %v370, %v369
      %v377 = vpack.c.b16 %v372, %v371
      %v378 = vpack.c.b16 %v374, %v373
      %vm383 = vcmask 523264
      %v385 = vsel %vm383, %v250, 0
      %387 = vmatprep.subr.bf16.mxu0 0
      %388 = vmatpush1.bf16.msra.mxu0 0
      %389 = vmatprep.subr.bf16.mxu0 0
      %390 = vmatpush1.bf16.msra.mxu0 0
      %391 = vmatprep.subr.bf16.mxu0 0
      %392 = vmatpush1.bf16.msra.mxu0 0
      %393 = vmatprep.subr.bf16.mxu0 0
      %394 = vmatpush1.bf16.msra.mxu0 0
      %395 = vmatprep.subr.bf16.mxu0 0
      %396 = vmatpush1.bf16.msra.mxu0 %v378
      %397 = vmatprep.subr.bf16.mxu0 0
      %398 = vmatpush1.bf16.msra.mxu0 %v377
      %399 = vmatprep.subr.bf16.mxu0 0
      %400 = vmatpush1.bf16.msra.mxu0 %v376
      %401 = vmatprep.subr.bf16.mxu0 0
      %402 = vmatpush1.bf16.msra.mxu0 %v375
      %403 = vmatprep.subr.bf16.mxu0 0
      %404 = vmatpush2.bf16.msra.mxu0 0
      %405 = vmatprep.subr.bf16.mxu0 0
      %406 = vmatpush2.bf16.msra.mxu0 0
      %407 = vmatprep.subr.bf16.mxu0 0
      %408 = vmatpush2.bf16.msra.mxu0 0
      %409 = vmatprep.subr.bf16.mxu0 0
      %410 = vmatpush2.bf16.msra.mxu0 0
      %411 = vmatprep.subr.bf16.mxu0 0
      %412 = vmatpush2.bf16.msra.mxu0 0
      %413 = vmatprep.subr.bf16.mxu0 0
      %414 = vmatpush2.bf16.msra.mxu0 0
      %415 = vmatprep.subr.bf16.mxu0 0
      %416 = vmatpush2.bf16.msra.mxu0 0
      %417 = vmatprep.subr.bf16.mxu0 0
      %418 = vmatpush2.bf16.msra.mxu0 0
      %419 = vmatprep.mubr.bf16.mxu0 0
      %420 = vmatmul.mubr.bf16.gmra.mxu0 %v385
      %v421 = vpop.f32.mrf.mxu0
      %v422 = vadd.f32 0.0, %v421
      %v423 = vpop.f32.mrf.mxu0
      %v424 = vpop.f32.mrf.mxu0
      %v425 = vadd.f32 0.0, %v424
      %v426 = vpop.f32.mrf.mxu0
      %427 = vdwg.mxu0
      %v436 = vunpack.c.l.b16 %v342
      %v437 = vunpack.c.l.b16 %v343
      %v438 = vunpack.c.l.b16 %v344
      %v439 = vunpack.c.l.b16 %v345
      %v440 = vunpack.c.l.b16 %v346
      %v441 = vunpack.c.l.b16 %v347
      %v442 = vunpack.c.l.b16 %v348
      %v443 = vunpack.c.l.b16 %v349
      %v444 = vpack.c.b16 %v437, %v436
      %v445 = vpack.c.b16 %v439, %v438
      %v446 = vpack.c.b16 %v441, %v440
      %v447 = vpack.c.b16 %v443, %v442
      %v453 = vsel %vm383, %v296, 0
      %455 = vmatprep.subr.bf16.mxu0 0
      %456 = vmatpush1.bf16.msra.mxu0 0
      %457 = vmatprep.subr.bf16.mxu0 0
      %458 = vmatpush1.bf16.msra.mxu0 0
      %459 = vmatprep.subr.bf16.mxu0 0
      %460 = vmatpush1.bf16.msra.mxu0 0
      %461 = vmatprep.subr.bf16.mxu0 0
      %462 = vmatpush1.bf16.msra.mxu0 0
      %463 = vmatprep.subr.bf16.mxu0 0
      %464 = vmatpush1.bf16.msra.mxu0 %v447
      %465 = vmatprep.subr.bf16.mxu0 0
      %466 = vmatpush1.bf16.msra.mxu0 %v446
      %467 = vmatprep.subr.bf16.mxu0 0
      %468 = vmatpush1.bf16.msra.mxu0 %v445
      %469 = vmatprep.subr.bf16.mxu0 0
      %470 = vmatpush1.bf16.msra.mxu0 %v444
      %471 = vmatprep.subr.bf16.mxu0 0
      %472 = vmatpush2.bf16.msra.mxu0 0
      %473 = vmatprep.subr.bf16.mxu0 0
      %474 = vmatpush2.bf16.msra.mxu0 0
      %475 = vmatprep.subr.bf16.mxu0 0
      %476 = vmatpush2.bf16.msra.mxu0 0
      %477 = vmatprep.subr.bf16.mxu0 0
      %478 = vmatpush2.bf16.msra.mxu0 0
      %479 = vmatprep.subr.bf16.mxu0 0
      %480 = vmatpush2.bf16.msra.mxu0 0
      %481 = vmatprep.subr.bf16.mxu0 0
      %482 = vmatpush2.bf16.msra.mxu0 0
      %483 = vmatprep.subr.bf16.mxu0 0
      %484 = vmatpush2.bf16.msra.mxu0 0
      %485 = vmatprep.subr.bf16.mxu0 0
      %486 = vmatpush2.bf16.msra.mxu0 0
      %487 = vmatprep.mubr.bf16.mxu0 0
      %488 = vmatmul.mubr.bf16.gmra.mxu0 %v453
      %v489 = vpop.f32.mrf.mxu0
      %v490 = vadd.f32 %v422, %v489
      %v491 = vpop.f32.mrf.mxu0
      %v492 = vpop.f32.mrf.mxu0
      %v493 = vadd.f32 %v425, %v492
      %v494 = vpop.f32.mrf.mxu0
      %495 = vdwg.mxu0
      %s496 = scalar_lea.vmem %s1, 64
      %v497 = vld [vmem:[%s496] sm:$0xf]
      %v498 = vld [vmem:[%s496 + $0x4] sm:$0xf]
      %v499 = vld [vmem:[%s496 + $0x8] sm:$0xf]
      %v500 = vld [vmem:[%s496 + $0xc] sm:$0xf]
      %v501 = vld [vmem:[%s496 + $0x10] sm:$0xf]
      %v502 = vld [vmem:[%s496 + $0x14] sm:$0xf]
      %v503 = vld [vmem:[%s496 + $0x18] sm:$0xf]
      %v504 = vld [vmem:[%s496 + $0x1c] sm:$0xf]
      %v513 = vunpack.c.l.b16 %v497
      %v514 = vunpack.c.l.b16 %v498
      %v515 = vunpack.c.l.b16 %v499
      %v516 = vunpack.c.l.b16 %v500
      %v517 = vunpack.c.l.b16 %v501
      %v518 = vunpack.c.l.b16 %v502
      %v519 = vunpack.c.l.b16 %v503
      %v520 = vunpack.c.l.b16 %v504
      %v521 = vpack.c.b16 %v514, %v513
      %v522 = vpack.c.b16 %v516, %v515
      %v523 = vpack.c.b16 %v518, %v517
      %v524 = vpack.c.b16 %v520, %v519
      %v530 = vsel %vm383, %v341, 0
      %532 = vmatprep.subr.bf16.mxu0 0
      %533 = vmatpush1.bf16.msra.mxu0 0
      %534 = vmatprep.subr.bf16.mxu0 0
      %535 = vmatpush1.bf16.msra.mxu0 0
      %536 = vmatprep.subr.bf16.mxu0 0
      %537 = vmatpush1.bf16.msra.mxu0 0
      %538 = vmatprep.subr.bf16.mxu0 0
      %539 = vmatpush1.bf16.msra.mxu0 0
      %540 = vmatprep.subr.bf16.mxu0 0
      %541 = vmatpush1.bf16.msra.mxu0 %v524
      %542 = vmatprep.subr.bf16.mxu0 0
      %543 = vmatpush1.bf16.msra.mxu0 %v523
      %544 = vmatprep.subr.bf16.mxu0 0
      %545 = vmatpush1.bf16.msra.mxu0 %v522
      %546 = vmatprep.subr.bf16.mxu0 0
      %547 = vmatpush1.bf16.msra.mxu0 %v521
      %548 = vmatprep.subr.bf16.mxu0 0
      %549 = vmatpush2.bf16.msra.mxu0 0
      %550 = vmatprep.subr.bf16.mxu0 0
      %551 = vmatpush2.bf16.msra.mxu0 0
      %552 = vmatprep.subr.bf16.mxu0 0
      %553 = vmatpush2.bf16.msra.mxu0 0
      %554 = vmatprep.subr.bf16.mxu0 0
      %555 = vmatpush2.bf16.msra.mxu0 0
      %556 = vmatprep.subr.bf16.mxu0 0
      %557 = vmatpush2.bf16.msra.mxu0 0
      %558 = vmatprep.subr.bf16.mxu0 0
      %559 = vmatpush2.bf16.msra.mxu0 0
      %560 = vmatprep.subr.bf16.mxu0 0
      %561 = vmatpush2.bf16.msra.mxu0 0
      %562 = vmatprep.subr.bf16.mxu0 0
      %563 = vmatpush2.bf16.msra.mxu0 0
      %564 = vmatprep.mubr.bf16.mxu0 0
      %565 = vmatmul.mubr.bf16.gmra.mxu0 %v530
      %v566 = vpop.f32.mrf.mxu0
      %v567 = vadd.f32 0.0, %v566
      %v568 = vpop.f32.mrf.mxu0
      %v569 = vpop.f32.mrf.mxu0
      %v570 = vadd.f32 0.0, %v569
      %v571 = vpop.f32.mrf.mxu0
      %572 = vdwg.mxu0
      %v573 = vadd.f32 %v490, %v567
      %v574 = vadd.f32 %v493, %v570
      %v575 = vld [vmem:[%s2] sm:$0x1]
      %v577 = vlaneseq
      %v578 = vshrl.u32 %v577, 7
      %v579 = vsub.s32 0, %v578
      %v580 = vrot.slane %v575, %v579
      %v582 = vadd.f32 %v573, %v580
      %v583 = vadd.f32 %v574, %v580
      %v584 = vmax.f32 %v582, 0.0
      %v585 = vmax.f32 %v583, 0.0
      %v586 = vpack.c.bf16 %v585, %v584
      %587 = vmatprep.subr.bf16.mxu0 0
      %588 = vmatpush1.bf16.msra.mxu0 0
      %589 = vmatprep.subr.bf16.mxu0 0
      %590 = vmatpush1.bf16.msra.mxu0 0
      %591 = vmatprep.subr.bf16.mxu0 0
      %592 = vmatpush1.bf16.msra.mxu0 0
      %593 = vmatprep.subr.bf16.mxu0 0
      %594 = vmatpush1.bf16.msra.mxu0 0
      %595 = vmatprep.subr.bf16.mxu0 0
      %596 = vmatpush1.bf16.msra.mxu0 0
      %597 = vmatprep.subr.bf16.mxu0 0
      %598 = vmatpush1.bf16.msra.mxu0 0
      %599 = vmatprep.subr.bf16.mxu0 0
      %600 = vmatpush1.bf16.msra.mxu0 0
      %601 = vmatprep.subr.bf16.mxu0 0
      %602 = vmatpush1.bf16.msra.mxu0 %v586
      %603 = vmatprep.subr.bf16.mxu0 0
      %604 = vmatpush2.bf16.msra.mxu0 0
      %605 = vmatprep.subr.bf16.mxu0 0
      %606 = vmatpush2.bf16.msra.mxu0 0
      %607 = vmatprep.subr.bf16.mxu0 0
      %608 = vmatpush2.bf16.msra.mxu0 0
      %609 = vmatprep.subr.bf16.mxu0 0
      %610 = vmatpush2.bf16.msra.mxu0 0
      %611 = vmatprep.subr.bf16.mxu0 0
      %612 = vmatpush2.bf16.msra.mxu0 0
      %613 = vmatprep.subr.bf16.mxu0 0
      %614 = vmatpush2.bf16.msra.mxu0 0
      %615 = vmatprep.subr.bf16.mxu0 0
      %616 = vmatpush2.bf16.msra.mxu0 0
      %617 = vmatprep.subr.bf16.mxu0 0
      %618 = vmatpush2.bf16.msra.mxu0 0
      %619 = vmatprep.mubr.bf16.mxu0 0
      %620 = vmatmul.mubr.bf16.gmra.mxu0 %v253
      %v621 = vpop.f32.mrf.mxu0
      %v622 = vadd.f32 0.0, %v621
      %v623 = vpop.f32.mrf.mxu0
      %v624 = vpop.f32.mrf.mxu0
      %v625 = vadd.f32 0.0, %v624
      %v626 = vpop.f32.mrf.mxu0
      %627 = vdwg.mxu0
      %v628 = vpack.c.bf16 %v625, %v622
      %629 = vmatprep.subr.bf16.mxu0 0
      %630 = vmatpush1.bf16.msra.mxu0 0
      %631 = vmatprep.subr.bf16.mxu0 0
      %632 = vmatpush1.bf16.msra.mxu0 0
      %633 = vmatprep.subr.bf16.mxu0 0
      %634 = vmatpush1.bf16.msra.mxu0 0
      %635 = vmatprep.subr.bf16.mxu0 0
      %636 = vmatpush1.bf16.msra.mxu0 0
      %637 = vmatprep.subr.bf16.mxu0 0
      %638 = vmatpush1.bf16.msra.mxu0 0
      %639 = vmatprep.subr.bf16.mxu0 0
      %640 = vmatpush1.bf16.msra.mxu0 0
      %641 = vmatprep.subr.bf16.mxu0 0
      %642 = vmatpush1.bf16.msra.mxu0 0
      %643 = vmatprep.subr.bf16.mxu0 0
      %644 = vmatpush1.bf16.msra.mxu0 %v586
      %645 = vmatprep.subr.bf16.mxu0 0
      %646 = vmatpush2.bf16.msra.mxu0 0
      %647 = vmatprep.subr.bf16.mxu0 0
      %648 = vmatpush2.bf16.msra.mxu0 0
      %649 = vmatprep.subr.bf16.mxu0 0
      %650 = vmatpush2.bf16.msra.mxu0 0
      %651 = vmatprep.subr.bf16.mxu0 0
      %652 = vmatpush2.bf16.msra.mxu0 0
      %653 = vmatprep.subr.bf16.mxu0 0
      %654 = vmatpush2.bf16.msra.mxu0 0
      %655 = vmatprep.subr.bf16.mxu0 0
      %656 = vmatpush2.bf16.msra.mxu0 0
      %657 = vmatprep.subr.bf16.mxu0 0
      %658 = vmatpush2.bf16.msra.mxu0 0
      %659 = vmatprep.subr.bf16.mxu0 0
      %660 = vmatpush2.bf16.msra.mxu0 0
      %661 = vmatprep.mubr.bf16.mxu0 0
      %662 = vmatmul.mubr.bf16.gmra.mxu0 %v298
      %v663 = vpop.f32.mrf.mxu0
      %v664 = vadd.f32 0.0, %v663
      %v665 = vpop.f32.mrf.mxu0
      %v666 = vpop.f32.mrf.mxu0
      %v667 = vadd.f32 0.0, %v666
      %v668 = vpop.f32.mrf.mxu0
      %669 = vdwg.mxu0
      %v670 = vpack.c.bf16 %v667, %v664
      %v671 = vld [vmem:[%s3] sm:$0xf]
      %v672 = vld [vmem:[%s3 + $0x4] sm:$0xf]
      %v673 = vld [vmem:[%s3 + $0x8] sm:$0xf]
      %v674 = vld [vmem:[%s3 + $0xc] sm:$0xf]
      %v675 = vld [vmem:[%s3 + $0x10] sm:$0xf]
      %v676 = vld [vmem:[%s3 + $0x14] sm:$0xf]
      %v677 = vld [vmem:[%s3 + $0x18] sm:$0xf]
      %v678 = vld [vmem:[%s3 + $0x1c] sm:$0xf]
      %v679 = vld [vmem:[%s3 + $0x20] sm:$0xf]
      %v680 = vld [vmem:[%s3 + $0x24] sm:$0xf]
      %v681 = vld [vmem:[%s3 + $0x28] sm:$0xf]
      %v682 = vld [vmem:[%s3 + $0x2c] sm:$0xf]
      %v683 = vld [vmem:[%s3 + $0x30] sm:$0xf]
      %v684 = vld [vmem:[%s3 + $0x34] sm:$0xf]
      %v685 = vld [vmem:[%s3 + $0x38] sm:$0xf]
      %v686 = vld [vmem:[%s3 + $0x3c] sm:$0xf]
      %s687 = scalar_lea.vmem %s3, 64
      %v688 = vld [vmem:[%s687] sm:$0xf]
      %v689 = vld [vmem:[%s687 + $0x4] sm:$0xf]
      %v690 = vld [vmem:[%s687 + $0x8] sm:$0xf]
      %v691 = vld [vmem:[%s687 + $0xc] sm:$0xf]
      %v692 = vld [vmem:[%s687 + $0x10] sm:$0xf]
      %v693 = vld [vmem:[%s687 + $0x14] sm:$0xf]
      %v694 = vld [vmem:[%s687 + $0x18] sm:$0xf]
      %v695 = vld [vmem:[%s687 + $0x1c] sm:$0xf]
      %v696 = vld [vmem:[%s687 + $0x20] sm:$0xf]
      %v697 = vld [vmem:[%s687 + $0x24] sm:$0xf]
      %v698 = vld [vmem:[%s687 + $0x28] sm:$0xf]
      %v699 = vld [vmem:[%s687 + $0x2c] sm:$0xf]
      %v700 = vld [vmem:[%s687 + $0x30] sm:$0xf]
      %v701 = vld [vmem:[%s687 + $0x34] sm:$0xf]
      %v702 = vld [vmem:[%s687 + $0x38] sm:$0xf]
      %v703 = vld [vmem:[%s687 + $0x3c] sm:$0xf]
      %v720 = vunpack.c.l.b16 %v688
      %v721 = vunpack.c.l.b16 %v689
      %v722 = vunpack.c.l.b16 %v690
      %v723 = vunpack.c.l.b16 %v691
      %v724 = vunpack.c.l.b16 %v692
      %v725 = vunpack.c.l.b16 %v693
      %v726 = vunpack.c.l.b16 %v694
      %v727 = vunpack.c.l.b16 %v695
      %v728 = vunpack.c.l.b16 %v696
      %v729 = vunpack.c.l.b16 %v697
      %v730 = vunpack.c.l.b16 %v698
      %v731 = vunpack.c.l.b16 %v699
      %v732 = vunpack.c.l.b16 %v700
      %v733 = vunpack.c.l.b16 %v701
      %v734 = vunpack.c.l.b16 %v702
      %v735 = vunpack.c.l.b16 %v703
      %v736 = vpack.c.b16 %v721, %v720
      %v737 = vpack.c.b16 %v723, %v722
      %v738 = vpack.c.b16 %v725, %v724
      %v739 = vpack.c.b16 %v727, %v726
      %v740 = vpack.c.b16 %v729, %v728
      %v741 = vpack.c.b16 %v731, %v730
      %v742 = vpack.c.b16 %v733, %v732
      %v743 = vpack.c.b16 %v735, %v734
      %752 = vmatprep.subr.bf16.mxu0 0
      %753 = vmatpush1.bf16.msra.mxu0 %v743
      %754 = vmatprep.subr.bf16.mxu0 0
      %755 = vmatpush1.bf16.msra.mxu0 %v742
      %756 = vmatprep.subr.bf16.mxu0 0
      %757 = vmatpush1.bf16.msra.mxu0 %v741
      %758 = vmatprep.subr.bf16.mxu0 0
      %759 = vmatpush1.bf16.msra.mxu0 %v740
      %760 = vmatprep.subr.bf16.mxu0 0
      %761 = vmatpush1.bf16.msra.mxu0 %v739
      %762 = vmatprep.subr.bf16.mxu0 0
      %763 = vmatpush1.bf16.msra.mxu0 %v738
      %764 = vmatprep.subr.bf16.mxu0 0
      %765 = vmatpush1.bf16.msra.mxu0 %v737
      %766 = vmatprep.subr.bf16.mxu0 0
      %767 = vmatpush1.bf16.msra.mxu0 %v736
      %768 = vmatprep.subr.bf16.mxu0 0
      %769 = vmatpush2.bf16.msra.mxu0 0
      %770 = vmatprep.subr.bf16.mxu0 0
      %771 = vmatpush2.bf16.msra.mxu0 0
      %772 = vmatprep.subr.bf16.mxu0 0
      %773 = vmatpush2.bf16.msra.mxu0 0
      %774 = vmatprep.subr.bf16.mxu0 0
      %775 = vmatpush2.bf16.msra.mxu0 0
      %776 = vmatprep.subr.bf16.mxu0 0
      %777 = vmatpush2.bf16.msra.mxu0 0
      %778 = vmatprep.subr.bf16.mxu0 0
      %779 = vmatpush2.bf16.msra.mxu0 0
      %780 = vmatprep.subr.bf16.mxu0 0
      %781 = vmatpush2.bf16.msra.mxu0 0
      %782 = vmatprep.subr.bf16.mxu0 0
      %783 = vmatpush2.bf16.msra.mxu0 0
      %784 = vmatprep.mubr.bf16.mxu0 0
      %785 = vmatmul.mubr.bf16.gmra.mxu0 %v586
      %v786 = vpop.f32.mrf.mxu0
      %v787 = vadd.f32 0.0, %v786
      %v788 = vpop.f32.mrf.mxu0
      %v789 = vpop.f32.mrf.mxu0
      %v790 = vadd.f32 0.0, %v789
      %v791 = vpop.f32.mrf.mxu0
      %792 = vdwg.mxu0
      %v809 = vunpack.c.l.b16 %v671
      %v810 = vunpack.c.l.b16 %v672
      %v811 = vunpack.c.l.b16 %v673
      %v812 = vunpack.c.l.b16 %v674
      %v813 = vunpack.c.l.b16 %v675
      %v814 = vunpack.c.l.b16 %v676
      %v815 = vunpack.c.l.b16 %v677
      %v816 = vunpack.c.l.b16 %v678
      %v817 = vunpack.c.l.b16 %v679
      %v818 = vunpack.c.l.b16 %v680
      %v819 = vunpack.c.l.b16 %v681
      %v820 = vunpack.c.l.b16 %v682
      %v821 = vunpack.c.l.b16 %v683
      %v822 = vunpack.c.l.b16 %v684
      %v823 = vunpack.c.l.b16 %v685
      %v824 = vunpack.c.l.b16 %v686
      %v825 = vpack.c.b16 %v810, %v809
      %v826 = vpack.c.b16 %v812, %v811
      %v827 = vpack.c.b16 %v814, %v813
      %v828 = vpack.c.b16 %v816, %v815
      %v829 = vpack.c.b16 %v818, %v817
      %v830 = vpack.c.b16 %v820, %v819
      %v831 = vpack.c.b16 %v822, %v821
      %v832 = vpack.c.b16 %v824, %v823
      %841 = vmatprep.subr.bf16.mxu0 0
      %842 = vmatpush1.bf16.msra.mxu0 %v832
      %843 = vmatprep.subr.bf16.mxu0 0
      %844 = vmatpush1.bf16.msra.mxu0 %v831
      %845 = vmatprep.subr.bf16.mxu0 0
      %846 = vmatpush1.bf16.msra.mxu0 %v830
      %847 = vmatprep.subr.bf16.mxu0 0
      %848 = vmatpush1.bf16.msra.mxu0 %v829
      %849 = vmatprep.subr.bf16.mxu0 0
      %850 = vmatpush1.bf16.msra.mxu0 %v828
      %851 = vmatprep.subr.bf16.mxu0 0
      %852 = vmatpush1.bf16.msra.mxu0 %v827
      %853 = vmatprep.subr.bf16.mxu0 0
      %854 = vmatpush1.bf16.msra.mxu0 %v826
      %855 = vmatprep.subr.bf16.mxu0 0
      %856 = vmatpush1.bf16.msra.mxu0 %v825
      %857 = vmatprep.subr.bf16.mxu0 0
      %858 = vmatpush2.bf16.msra.mxu0 0
      %859 = vmatprep.subr.bf16.mxu0 0
      %860 = vmatpush2.bf16.msra.mxu0 0
      %861 = vmatprep.subr.bf16.mxu0 0
      %862 = vmatpush2.bf16.msra.mxu0 0
      %863 = vmatprep.subr.bf16.mxu0 0
      %864 = vmatpush2.bf16.msra.mxu0 0
      %865 = vmatprep.subr.bf16.mxu0 0
      %866 = vmatpush2.bf16.msra.mxu0 0
      %867 = vmatprep.subr.bf16.mxu0 0
      %868 = vmatpush2.bf16.msra.mxu0 0
      %869 = vmatprep.subr.bf16.mxu0 0
      %870 = vmatpush2.bf16.msra.mxu0 0
      %871 = vmatprep.subr.bf16.mxu0 0
      %872 = vmatpush2.bf16.msra.mxu0 0
      %873 = vmatprep.mubr.bf16.mxu0 0
      %874 = vmatmul.mubr.bf16.gmra.mxu0 %v628
      %v875 = vpop.f32.mrf.mxu0
      %v876 = vadd.f32 %v787, %v875
      %v877 = vpop.f32.mrf.mxu0
      %v878 = vpop.f32.mrf.mxu0
      %v879 = vadd.f32 %v790, %v878
      %v880 = vpop.f32.mrf.mxu0
      %881 = vdwg.mxu0
      %s882 = scalar_lea.vmem %s3, 128
      %v883 = vld [vmem:[%s882] sm:$0xf]
      %v884 = vld [vmem:[%s882 + $0x4] sm:$0xf]
      %v885 = vld [vmem:[%s882 + $0x8] sm:$0xf]
      %v886 = vld [vmem:[%s882 + $0xc] sm:$0xf]
      %v887 = vld [vmem:[%s882 + $0x10] sm:$0xf]
      %v888 = vld [vmem:[%s882 + $0x14] sm:$0xf]
      %v889 = vld [vmem:[%s882 + $0x18] sm:$0xf]
      %v890 = vld [vmem:[%s882 + $0x1c] sm:$0xf]
      %v891 = vld [vmem:[%s882 + $0x20] sm:$0xf]
      %v892 = vld [vmem:[%s882 + $0x24] sm:$0xf]
      %v893 = vld [vmem:[%s882 + $0x28] sm:$0xf]
      %v894 = vld [vmem:[%s882 + $0x2c] sm:$0xf]
      %v895 = vld [vmem:[%s882 + $0x30] sm:$0xf]
      %v896 = vld [vmem:[%s882 + $0x34] sm:$0xf]
      %v897 = vld [vmem:[%s882 + $0x38] sm:$0xf]
      %v898 = vld [vmem:[%s882 + $0x3c] sm:$0xf]
      %v915 = vunpack.c.l.b16 %v883
      %v916 = vunpack.c.l.b16 %v884
      %v917 = vunpack.c.l.b16 %v885
      %v918 = vunpack.c.l.b16 %v886
      %v919 = vunpack.c.l.b16 %v887
      %v920 = vunpack.c.l.b16 %v888
      %v921 = vunpack.c.l.b16 %v889
      %v922 = vunpack.c.l.b16 %v890
      %v923 = vunpack.c.l.b16 %v891
      %v924 = vunpack.c.l.b16 %v892
      %v925 = vunpack.c.l.b16 %v893
      %v926 = vunpack.c.l.b16 %v894
      %v927 = vunpack.c.l.b16 %v895
      %v928 = vunpack.c.l.b16 %v896
      %v929 = vunpack.c.l.b16 %v897
      %v930 = vunpack.c.l.b16 %v898
      %v931 = vpack.c.b16 %v916, %v915
      %v932 = vpack.c.b16 %v918, %v917
      %v933 = vpack.c.b16 %v920, %v919
      %v934 = vpack.c.b16 %v922, %v921
      %v935 = vpack.c.b16 %v924, %v923
      %v936 = vpack.c.b16 %v926, %v925
      %v937 = vpack.c.b16 %v928, %v927
      %v938 = vpack.c.b16 %v930, %v929
      %947 = vmatprep.subr.bf16.mxu0 0
      %948 = vmatpush1.bf16.msra.mxu0 %v938
      %949 = vmatprep.subr.bf16.mxu0 0
      %950 = vmatpush1.bf16.msra.mxu0 %v937
      %951 = vmatprep.subr.bf16.mxu0 0
      %952 = vmatpush1.bf16.msra.mxu0 %v936
      %953 = vmatprep.subr.bf16.mxu0 0
      %954 = vmatpush1.bf16.msra.mxu0 %v935
      %955 = vmatprep.subr.bf16.mxu0 0
      %956 = vmatpush1.bf16.msra.mxu0 %v934
      %957 = vmatprep.subr.bf16.mxu0 0
      %958 = vmatpush1.bf16.msra.mxu0 %v933
      %959 = vmatprep.subr.bf16.mxu0 0
      %960 = vmatpush1.bf16.msra.mxu0 %v932
      %961 = vmatprep.subr.bf16.mxu0 0
      %962 = vmatpush1.bf16.msra.mxu0 %v931
      %963 = vmatprep.subr.bf16.mxu0 0
      %964 = vmatpush2.bf16.msra.mxu0 0
      %965 = vmatprep.subr.bf16.mxu0 0
      %966 = vmatpush2.bf16.msra.mxu0 0
      %967 = vmatprep.subr.bf16.mxu0 0
      %968 = vmatpush2.bf16.msra.mxu0 0
      %969 = vmatprep.subr.bf16.mxu0 0
      %970 = vmatpush2.bf16.msra.mxu0 0
      %971 = vmatprep.subr.bf16.mxu0 0
      %972 = vmatpush2.bf16.msra.mxu0 0
      %973 = vmatprep.subr.bf16.mxu0 0
      %974 = vmatpush2.bf16.msra.mxu0 0
      %975 = vmatprep.subr.bf16.mxu0 0
      %976 = vmatpush2.bf16.msra.mxu0 0
      %977 = vmatprep.subr.bf16.mxu0 0
      %978 = vmatpush2.bf16.msra.mxu0 0
      %979 = vmatprep.mubr.bf16.mxu0 0
      %980 = vmatmul.mubr.bf16.gmra.mxu0 %v670
      %v981 = vpop.f32.mrf.mxu0
      %v982 = vadd.f32 0.0, %v981
      %v983 = vpop.f32.mrf.mxu0
      %v984 = vpop.f32.mrf.mxu0
      %v985 = vadd.f32 0.0, %v984
      %v986 = vpop.f32.mrf.mxu0
      %987 = vdwg.mxu0
      %v988 = vadd.f32 %v876, %v982
      %v989 = vadd.f32 %v879, %v985
      %v990 = vld [vmem:[%s4] sm:$0x1]
      %v992 = vlaneseq
      %v993 = vshrl.u32 %v992, 7
      %v994 = vsub.s32 0, %v993
      %v995 = vrot.slane %v990, %v994
      %v997 = vadd.f32 %v988, %v995
      %v998 = vadd.f32 %v989, %v995
      %v999 = vmax.f32 %v997, 0.0
      %v1000 = vmax.f32 %v998, 0.0
      %1001 = vst [vmem:[%s224] sm:$0xff] %v999
      %1002 = vst [vmem:[%s224 + $0x8] sm:$0xff] %v1000
      %p1003 = scmp.lt.s32.totalorder %s16, 1
      %s1004 = scalar_select %p1003, %s16, 1
      %s1005 = smul.addr %s1004, 2
      %s1006 = smul.addr %s1005, 8
      %s1007 = scalar_lea.vmem %s5, %s1006
      // Predicated region
      $region41: #{a_call__.1} parent=39 // pred_check
        %p1008 = pneg %p144
      $region42: #{a_call__.1} parent=39 // pred_check_branch
        %1010 = sbr.rel (%p1008) target = $region44
      $region43: #{a_call__.1} parent=39 // pred_region
        _
      $region44: #{a_call__.1} parent=39 // pred_fallthru
        _
    $region40: #{a_call__.1} parent=5 // pred_fallthru
      _
    %p1011 = scmp.le.s32.totalorder 2, %s11
    // Predicated region
    $region45: #{a_call__.1} parent=5 // pred_check
      %p1012 = pneg %p1011
    $region46: #{a_call__.1} parent=5 // pred_check_branch
      %1014 = sbr.rel (%p1012) target = $region48
    $region47: #{a_call__.1} parent=5 // pred_region
      %s1015 = ssub.s32 %s11, 2
      // Predicated region
      $region49: #{a_call__.1} parent=47 // pred_check
        %p1016 = pneg %p150
      $region50: #{a_call__.1} parent=47 // pred_check_branch
        %1018 = sbr.rel (%p1016) target = $region52
      $region51: #{a_call__.1} parent=47 // pred_region
        %p1019 = scmp.lt.s32.totalorder %s17, 1
        %s1020 = scalar_select %p1019, %s17, 1
        %s1021 = smul.addr %s1020, 2
        %s1022 = smul.addr %s1021, 8
        %s1023 = scalar_lea.vmem %s5, %s1022
      $region52: #{a_call__.1} parent=47 // pred_fallthru
        _
    $region48: #{a_call__.1} parent=5 // pred_fallthru
      _
  $region6: #{a_call__.1} parent=0 // loop_footer
    %s15 = sadd.s32 1, %s11
  $region7: #{a_call__.1} parent=0 // loop_footer_branch
    %10 = sbr.rel target = $region3
  $region8: #{a_call__.1} parent=0 // loop_exit
    _

</llo_original>
